<compile_context>
chip_gen: v5e
topology: v5e:2x2
jax: 0.10.0
libtpu: 0.0.40
codegen_flags: <defaults>
</compile_context>

<pallas_src>
import jax
import jax.numpy as jnp
from jax.experimental import pallas as pl
from jax.experimental.pallas import tpu as pltpu

BETA = 0.11
HALF_BETA = 0.5 * BETA            # constant for the linear (|x| >= beta) branch
HALF_OVER_BETA = 0.5 / BETA       # multiply instead of a per-element divide
LANE = 128


def _smooth_l1_kernel(pred_ref, target_ref, out_ref):
    # Compute in f32 regardless of input dtype (parity with f32 reference);
    # the cast is wall-clock-free under the HBM stream.
    p = pred_ref[...].astype(jnp.float32)
    t = target_ref[...].astype(jnp.float32)
    x = jnp.abs(p - t)
    l1 = x - HALF_BETA
    l2 = (x * x) * HALF_OVER_BETA
    out_ref[...] = jnp.where(x >= BETA, l1, l2).astype(out_ref.dtype)


def _round_up(v, m):
    return -(-v // m) * m


def _smooth_l1_jnp(pred, target, out_dtype):
    """Plain-jnp path for the <128-element tail / tiny inputs."""
    x = jnp.abs(pred.astype(jnp.float32) - target.astype(jnp.float32))
    out = jnp.where(x >= BETA, x - HALF_BETA, (x * x) * HALF_OVER_BETA)
    return out.astype(out_dtype)


def smooth_l1_loss(pred, target, *, tile_rows=8192):
    assert pred.shape == target.shape and pred.dtype == target.dtype
    orig_shape = pred.shape
    dtype = pred.dtype
    itemsize = jnp.dtype(dtype).itemsize
    n = pred.size

    pred_flat = pred.reshape(-1)
    target_flat = target.reshape(-1)

    # Split into a lane-aligned main part (kernel) and a <128-element tail
    # (plain jnp) — no jnp.pad full-copy of the operands on the fallback path.
    main = (n // LANE) * LANE
    tail = n - main

    if main == 0:
        # Tiny input: not worth a kernel launch.
        out = _smooth_l1_jnp(pred_flat, target_flat, dtype)
        return out.reshape(orig_shape)

    rows = main // LANE
    pred_f = pred_flat[:main].reshape(rows, LANE)
    target_f = target_flat[:main].reshape(rows, LANE)

    # Dtype-aware sublane packing granule: 8 rows (f32), 16 (bf16/f16),
    # 32 (int8/fp8).  Scale tile_rows so bytes/step stays constant.
    granule = max(8, 32 // itemsize)
    dtype_scale = max(1, 4 // itemsize)
    max_tile_rows_by_vmem = (8 << 20) // (LANE * itemsize)   # <= 8 MiB/operand

    if rows <= granule:
        tr = rows                                            # one full-extent block
    else:
        tr = min(tile_rows * dtype_scale, max_tile_rows_by_vmem,
                 _round_up(rows, granule))
        tr = _round_up(tr, granule)
    grid_rows = pl.cdiv(rows, tr)

    # Keep >= 2 grid steps so a second TensorCore (v7x) gets work, but only
    # when each half is still >= 1 MiB/operand (otherwise the extra step +
    # masked partial block is a net loss on single-TC v5e/v6e).
    if grid_rows < 2 and rows > granule and (rows * LANE * itemsize) // 2 >= (1 << 20):
        tr = _round_up(pl.cdiv(rows, 2), granule)
        grid_rows = pl.cdiv(rows, tr)

    # Scoped-VMEM limit: 3 operands x 2 pipeline buffers + headroom, clamped
    # under v7x's 64 MiB per-TC physical VMEM.
    tile_bytes = tr * LANE * itemsize
    vmem_limit = min(max(6 * tile_bytes + (4 << 20), 32 << 20), 56 << 20)

    cost = pl.CostEstimate(
        flops=5 * rows * LANE,
        transcendentals=0,
        bytes_accessed=3 * rows * LANE * itemsize,
    )

    out_f = pl.pallas_call(
        _smooth_l1_kernel,
        out_shape=jax.ShapeDtypeStruct((rows, LANE), dtype),
        grid_spec=pltpu.PrefetchScalarGridSpec(
            num_scalar_prefetch=0,
            grid=(grid_rows,),
            in_specs=[
                pl.BlockSpec((tr, LANE), lambda i: (i, 0)),
                pl.BlockSpec((tr, LANE), lambda i: (i, 0)),
            ],
            out_specs=pl.BlockSpec((tr, LANE), lambda i: (i, 0)),
        ),
        compiler_params=pltpu.CompilerParams(
            dimension_semantics=("parallel",),
            vmem_limit_bytes=vmem_limit,
        ),
        cost_estimate=cost,
    )(pred_f, target_f)

    out_flat = out_f.reshape(-1)
    if tail:
        out_tail = _smooth_l1_jnp(pred_flat[main:], target_flat[main:], dtype)
        out_flat = jnp.concatenate([out_flat, out_tail])
    return out_flat.reshape(orig_shape)


def smooth_l1_loss_ref(pred, target):
    x = jnp.abs(pred - target)
    l1 = x - 0.5 * BETA
    l2 = 0.5 * x ** 2 / BETA
    return jnp.where(x >= BETA, l1, l2)


if __name__ == "__main__":
    key = jax.random.PRNGKey(0)
    k1, k2, k3, k4 = jax.random.split(key, 4)

    # Small shape consistent with RetinaNet box-regression tensors (NCHW).
    shape = (2, 4, 16, 16)
    pred = jax.random.normal(k1, shape, dtype=jnp.float32)
    target = jax.random.normal(k2, shape, dtype=jnp.float32)

    out = smooth_l1_loss(pred, target)
    out = jax.block_until_ready(out)
    ref = smooth_l1_loss_ref(pred, target)
    assert out.shape == shape
    assert jnp.allclose(out, ref, atol=1e-6, rtol=1e-5)

    # Exercise the non-multiple-of-128 path (kernel on main slab + jnp tail).
    shape2 = (5, 37)
    pred2 = jax.random.normal(k3, shape2, dtype=jnp.float32)
    target2 = jax.random.normal(k4, shape2, dtype=jnp.float32)
    out2 = jax.block_until_ready(smooth_l1_loss(pred2, target2))
    ref2 = smooth_l1_loss_ref(pred2, target2)
    assert out2.shape == shape2
    assert jnp.allclose(out2, ref2, atol=1e-6, rtol=1e-5)

    print("KERNEL_OK")
</pallas_src>

<mosaic_0001>
module attributes {stable_mosaic.version = 11 : i64} {
  func.func @_smooth_l1_kernel(%arg0: i32, %arg1: memref<16x128xf32, #tpu.memory_space<vmem>>, %arg2: memref<16x128xf32, #tpu.memory_space<vmem>>, %arg3: memref<16x128xf32, #tpu.memory_space<vmem>>) attributes {dimension_semantics = [#tpu.dimension_semantics<parallel>], iteration_bounds = array<i64: 1>, scalar_prefetch = 0 : i64, scratch_operands = 0 : i64, tpu.core_type = #tpu.core_type<tc>, window_params = [{transform_indices = @transform_0, window_bounds = array<i64: 16, 128>}, {transform_indices = @transform_1, window_bounds = array<i64: 16, 128>}, {transform_indices = @transform_2, window_bounds = array<i64: 16, 128>}]} {
    %c0 = arith.constant 0 : index
    %c0_0 = arith.constant 0 : index
    %0 = vector.load %arg1[%c0, %c0_0] : memref<16x128xf32, #tpu.memory_space<vmem>>, vector<16x128xf32>
    %c0_1 = arith.constant 0 : index
    %c0_2 = arith.constant 0 : index
    %1 = vector.load %arg2[%c0_1, %c0_2] : memref<16x128xf32, #tpu.memory_space<vmem>>, vector<16x128xf32>
    %2 = arith.subf %0, %1 : vector<16x128xf32>
    %3 = math.absf %2 : vector<16x128xf32>
    %cst = arith.constant 5.500000e-02 : f32
    %4 = vector.broadcast %cst : f32 to vector<16x128xf32>
    %5 = arith.subf %3, %4 : vector<16x128xf32>
    %6 = arith.mulf %3, %3 : vector<16x128xf32>
    %cst_3 = arith.constant 4.5454545 : f32
    %7 = vector.broadcast %cst_3 : f32 to vector<16x128xf32>
    %8 = arith.mulf %6, %7 : vector<16x128xf32>
    %cst_4 = arith.constant 1.100000e-01 : f32
    %9 = vector.broadcast %cst_4 : f32 to vector<16x128xf32>
    %10 = arith.cmpf oge, %3, %9 : vector<16x128xf32>
    %11 = arith.select %10, %5, %8 : vector<16x128xi1>, vector<16x128xf32>
    %c0_5 = arith.constant 0 : index
    %c0_6 = arith.constant 0 : index
    %12 = vector.load %arg3[%c0_5, %c0_6] : memref<16x128xf32, #tpu.memory_space<vmem>>, vector<16x128xf32>
    tpu.vector_store %arg3[%c0_5, %c0_6], %11 {strides = array<i32>} : memref<16x128xf32, #tpu.memory_space<vmem>>, vector<16x128xf32>,
    return
  }
  func.func @transform_0(%arg0: i32) -> (i32, i32) {
    %c0_i32 = arith.constant 0 : i32
    %c0_i32_0 = arith.constant 0 : i32
    return %arg0, %c0_i32 : i32, i32
  }
  func.func @transform_1(%arg0: i32) -> (i32, i32) {
    %c0_i32 = arith.constant 0 : i32
    %c0_i32_0 = arith.constant 0 : i32
    return %arg0, %c0_i32 : i32, i32
  }
  func.func @transform_2(%arg0: i32) -> (i32, i32) {
    %c0_i32 = arith.constant 0 : i32
    %c0_i32_0 = arith.constant 0 : i32
    return %arg0, %c0_i32 : i32, i32
  }
}

</mosaic_0001>

<llo_original>
// kernel: tpu_custom_call.1
$region0: #{tpu_custom_call.1}
  #allocation0 [shape = 'u32[]', space=smem, size = 0x4, offset = 0x4, fixed_abs, tag = 'smem constant byte address 0x4 - core index']
  #allocation1 [shape = 'u32[72,128]{1,0:T(1,128)}', space=vmem, size = 0x9000, scoped, tag = 'internal scratch']
  %s0 = inlined_call_operand.hbm [shape: f32[16,128], index: 0, kind: input, shape index: {}]
  %s1 = inlined_call_operand.hbm [shape: f32[16,128], index: 1, kind: input, shape index: {}]
  %s2 = inlined_call_operand.hbm [shape: f32[16,128], index: 2, kind: output, shape index: {}]
  %s3 = sld [smem:[#allocation0]]
  $region26: #{tpu_custom_call.1} parent=0
    _
  %s5 = ssub.s32 1, %s3
  %s6 = scalar_select 0, %s5, %s3
  $region1: #{tpu_custom_call.1} parent=0
    #allocation2 [shape = 'u8[8192]{0}', space=vmem, size = 0x2000, scoped, tag = 'input window, operand 0, single buffered']
    #allocation3 [shape = 's32[1]{0}', space=sflag, size = 0x4, scoped, tag = 'scoped memory for tpu_custom_call.1']
    #allocation4 [shape = 's32[1]{0}', space=sflag, size = 0x4, scoped, tag = 'scoped memory for tpu_custom_call.1']
    #allocation5 [shape = 'u8[8192]{0}', space=vmem, size = 0x2000, scoped, tag = 'input window, operand 1, single buffered']
    #allocation6 [shape = 's32[1]{0}', space=sflag, size = 0x4, scoped, tag = 'scoped memory for tpu_custom_call.1']
    #allocation7 [shape = 'u8[8192]{0}', space=vmem, size = 0x2000, scoped, tag = 'output window, operand 0, single buffered']
    %7 = vsyncpa [#allocation3], 0
    %8 = vsyncpa [#allocation6], 0
    %9 = vsyncpa [#allocation4], 0
    // Predicated region
    $region2: #{tpu_custom_call.1} parent=1 // pred_check
      _
    $region3: #{tpu_custom_call.1} parent=1 // pred_check_branch
      %11 = sbr.rel (0) target = $region5
    $region4: #{tpu_custom_call.1} parent=1 // pred_region
      %13 = vsyncadd [#allocation3], 0
      %s14 = sshll.u32 %s0, 4
      %s15 = int_to_ptr.hbm [resolvable:$true] %s14
      %s16 = sshll.u32 [#allocation2], 4
      %s17 = int_to_ptr.vmem [resolvable:$true] %s16
      %22 = dma.hbm_to_vmem [thread:$0]  %s15, 256, %s17, [#allocation3], 128, 128, 8
    $region5: #{tpu_custom_call.1} parent=1 // pred_fallthru
      _
    // Predicated region
    $region6: #{tpu_custom_call.1} parent=1 // pred_check
      _
    $region7: #{tpu_custom_call.1} parent=1 // pred_check_branch
      %24 = sbr.rel (0) target = $region9
    $region8: #{tpu_custom_call.1} parent=1 // pred_region
      %26 = vsyncadd [#allocation6], 0
      %s27 = sshll.u32 %s1, 4
      %s28 = int_to_ptr.hbm [resolvable:$true] %s27
      %s29 = sshll.u32 [#allocation5], 4
      %s30 = int_to_ptr.vmem [resolvable:$true] %s29
      %35 = dma.hbm_to_vmem [thread:$0]  %s28, 256, %s30, [#allocation6], 128, 128, 8
    $region9: #{tpu_custom_call.1} parent=1 // pred_fallthru
      _
    // Predicated region
    $region10: #{tpu_custom_call.1} parent=1 // pred_check
      _
    $region11: #{tpu_custom_call.1} parent=1 // pred_check_branch
      %37 = sbr.rel (0) target = $region13
    $region12: #{tpu_custom_call.1} parent=1 // pred_region
      %39 = dma.done [#allocation3], 256
    $region13: #{tpu_custom_call.1} parent=1 // pred_fallthru
      _
    // Predicated region
    $region14: #{tpu_custom_call.1} parent=1 // pred_check
      _
    $region15: #{tpu_custom_call.1} parent=1 // pred_check_branch
      %41 = sbr.rel (0) target = $region17
    $region16: #{tpu_custom_call.1} parent=1 // pred_region
      %43 = dma.done [#allocation6], 256
    $region17: #{tpu_custom_call.1} parent=1 // pred_fallthru
      _
    %v44 = vld [vmem:[#allocation2] sm:$0xff]
    %v45 = vld [vmem:[#allocation2 + $0x8] sm:$0xff]
    %v46 = vld [vmem:[#allocation5] sm:$0xff]
    %v47 = vld [vmem:[#allocation5 + $0x8] sm:$0xff]
    %v48 = vsub.f32 %v44, %v46
    %v49 = vsub.f32 %v45, %v47
    %v50 = vand.u32 2147483647, %v48
    %v51 = vand.u32 2147483647, %v49
    %v52 = vsub.f32 %v50, 0.055
    %v53 = vsub.f32 %v51, 0.055
    %v54 = vmul.f32 %v50, %v50
    %v55 = vmul.f32 %v51, %v51
    %v56 = vmul.f32 %v54, 4.5454545
    %v57 = vmul.f32 %v55, 4.5454545
    %vm58 = vcmp.ge.f32.partialorder %v50, 0.11
    %vm59 = vcmp.ge.f32.partialorder %v51, 0.11
    %v60 = vsel %vm58, %v52, %v56
    %v61 = vsel %vm59, %v53, %v57
    %62 = vst [vmem:[#allocation7] sm:$0xff] %v60
    %63 = vst [vmem:[#allocation7 + $0x8] sm:$0xff] %v61
    // Predicated region
    $region18: #{tpu_custom_call.1} parent=1 // pred_check
      _
    $region19: #{tpu_custom_call.1} parent=1 // pred_check_branch
      %65 = sbr.rel (0) target = $region21
    $region20: #{tpu_custom_call.1} parent=1 // pred_region
      %67 = vsyncadd [#allocation4], 0
      %s68 = sshll.u32 [#allocation7], 4
      %s69 = int_to_ptr.vmem [resolvable:$true] %s68
      %s70 = sshll.u32 %s2, 4
      %s71 = int_to_ptr.hbm [resolvable:$true] %s70
      %76 = dma.vmem_to_hbm [thread:$0]  %s69, 256, %s71, [#allocation4], 128, 128, 8
    $region21: #{tpu_custom_call.1} parent=1 // pred_fallthru
      _
    // Predicated region
    $region22: #{tpu_custom_call.1} parent=1 // pred_check
      _
    $region23: #{tpu_custom_call.1} parent=1 // pred_check_branch
      %78 = sbr.rel (0) target = $region25
    $region24: #{tpu_custom_call.1} parent=1 // pred_region
      %80 = dma.done [#allocation4], 256
    $region25: #{tpu_custom_call.1} parent=1 // pred_fallthru
      _
    %81 = vsyncpa [#allocation3], 1
    %82 = vsyncpa [#allocation6], 1
    %83 = vsyncpa [#allocation4], 1

</llo_original>
